<compile_context>
chip_gen: v7x
topology: tpu7x:2x2x1
jax: 0.10.0
libtpu: 0.0.40
codegen_flags: <defaults>
</compile_context>

<pallas_src>
import jax
import jax.numpy as jnp
from jax.experimental import pallas as pl
from jax.experimental.pallas import tpu as pltpu


def attention_kernel(enc_ref, hid_ref, w_e_ref, w_h_ref, b_ref, v_ref, out_ref):
    # enc_ref : [Bb*L, E2]  encoder outputs, natural layout (bf16 or f32)
    # hid_ref : [Bb, D]     decoder hidden state (f32)
    # w_e_ref : [E2, D]     encoder half of attn weight (pre-transposed)
    # w_h_ref : [D, D]      hidden half of attn weight (pre-transposed)
    # b_ref   : [1, D]      attn bias
    # v_ref   : [1, D]      v weight (no bias)
    # out_ref : [Bb, L]     softmax attention weights (f32)
    Bb, L = out_ref.shape
    D = w_h_ref.shape[1]

    # Encoder projection on the MXU: all Bb*L rows at once, f32 accumulation.
    pre = jnp.dot(enc_ref[...], w_e_ref[...],
                  preferred_element_type=jnp.float32)                 # [Bb*L, D]

    # Hidden projection + bias: computed once per batch row (tiny matmul).
    hproj = jnp.dot(hid_ref[...], w_h_ref[...],
                    preferred_element_type=jnp.float32) + b_ref[...]   # [Bb, D]

    # energy = tanh(W_e @ enc + W_h @ hidden + b); broadcast hproj over L.
    # Reshape only splits the leading (sublane) axis into (Bb, L); minor dim
    # is untouched, so no lane-crossing relayout.
    energy = jnp.tanh(pre.reshape(Bb, L, D) + hproj[:, None, :])       # [Bb, L, D]

    # score = v . energy  — VPU multiply + lane reduce instead of a 1-row
    # MXU matmul (avoids an MXU push/pop for 1/128th of the array).
    score = jnp.sum(energy * v_ref[...], axis=-1)                      # [Bb, L]

    # Row-wise softmax over the sequence axis (f32 throughout).
    m = jnp.max(score, axis=-1, keepdims=True)
    e = jnp.exp(score - m)
    out_ref[...] = e * pl.reciprocal(jnp.sum(e, axis=-1, keepdims=True),
                                     approx=True)


def attention_forward(hidden, encoder_outputs, w_attn, b_attn, v_w,
                      *, block_b=None, use_bf16=True):
    """hidden [B, D], encoder_outputs [B, L, 2*enc] -> [B, L] softmax weights."""
    B, L, E2 = encoder_outputs.shape
    D = hidden.shape[1]

    # Split the fused Linear weight.  The reference concatenates
    # (hidden, encoder_outputs), so columns [:D] act on hidden, [D:] on the
    # encoder features.  (One-time tiny weight transpose so the kernel runs
    # plain [M,K] x [K,N] matmuls; no activation transpose anywhere.)
    w_h_t = jnp.transpose(w_attn[:, :D]).astype(jnp.float32)           # [D, D]
    w_e_t = jnp.transpose(w_attn[:, D:])                               # [E2, D]

    mxu_dtype = jnp.bfloat16 if use_bf16 else jnp.float32
    w_e_t = w_e_t.astype(mxu_dtype)
    b_in = b_attn.reshape(1, D).astype(jnp.float32)
    v_in = v_w.reshape(1, D).astype(jnp.float32)

    # Batch blocking: a single grid step for small B; otherwise 8 rows per
    # step (keeps the sublane dim of the [Bb, D]/[Bb, L] blocks aligned and
    # leaves >=2 parallel grid steps for the second TensorCore on v7x).
    if block_b is None:
        block_b = B if B <= 8 else 8
    nb = pl.cdiv(B, block_b)
    Bp = nb * block_b

    enc = encoder_outputs
    hid = hidden
    if Bp != B:
        enc = jnp.pad(enc, ((0, Bp - B), (0, 0), (0, 0)))
        hid = jnp.pad(hid, ((0, Bp - B), (0, 0)))
    # Contiguous reshape (free in HBM) — natural layout, no transpose.
    enc2d = enc.reshape(Bp * L, E2).astype(mxu_dtype)                  # [Bp*L, E2]
    hid_in = hid.astype(jnp.float32)

    out = pl.pallas_call(
        attention_kernel,
        out_shape=jax.ShapeDtypeStruct((Bp, L), jnp.float32),
        grid_spec=pltpu.PrefetchScalarGridSpec(
            num_scalar_prefetch=0,
            grid=(nb,),
            in_specs=[
                pl.BlockSpec((block_b * L, E2), lambda i: (i, 0)),
                pl.BlockSpec((block_b, D), lambda i: (i, 0)),
                pl.BlockSpec((E2, D), lambda i: (0, 0)),
                pl.BlockSpec((D, D), lambda i: (0, 0)),
                pl.BlockSpec((1, D), lambda i: (0, 0)),
                pl.BlockSpec((1, D), lambda i: (0, 0)),
            ],
            out_specs=pl.BlockSpec((block_b, L), lambda i: (i, 0)),
        ),
        compiler_params=pltpu.CompilerParams(
            dimension_semantics=("parallel",)),
    )(enc2d, hid_in, w_e_t, w_h_t, b_in, v_in)
    return out[:B]                                                     # [B, L]


if __name__ == "__main__":
    B, L, enc_dim, dec_dim = 2, 8, 16, 32
    in_dim = enc_dim * 2 + dec_dim

    key = jax.random.PRNGKey(0)
    k1, k2, k3, k4, k5 = jax.random.split(key, 5)

    hidden = jax.random.normal(k1, (B, dec_dim), jnp.float32)
    encoder_outputs = jax.random.normal(k2, (B, L, 2 * enc_dim), jnp.float32)

    # Deterministic parameter init matching nn.Linear shapes.
    bnd_a = 1.0 / (in_dim ** 0.5)
    w_attn = jax.random.uniform(k3, (dec_dim, in_dim), jnp.float32, -bnd_a, bnd_a)
    b_attn = jax.random.uniform(k4, (dec_dim,), jnp.float32, -bnd_a, bnd_a)
    bnd_v = 1.0 / (dec_dim ** 0.5)
    v_w = jax.random.uniform(k5, (1, dec_dim), jnp.float32, -bnd_v, bnd_v)

    out = attention_forward(hidden, encoder_outputs, w_attn, b_attn, v_w)
    jax.block_until_ready(out)

    # Pure-JAX f32 reference with the original fused (repeat+concat) formulation.
    hidden_rep = jnp.broadcast_to(hidden[:, None, :], (B, L, dec_dim))
    x = jnp.concatenate([hidden_rep, encoder_outputs], axis=2)
    energy = jnp.tanh(x @ w_attn.T + b_attn)
    ref = jax.nn.softmax((energy @ v_w.T)[..., 0], axis=1)

    assert out.shape == (B, L)
    # bf16 MXU inputs -> loosened tolerance vs. the f32 reference.
    assert jnp.allclose(out, ref, atol=2e-2, rtol=2e-2)
    print("KERNEL_OK")
</pallas_src>

<mosaic_0001>
module attributes {stable_mosaic.version = 11 : i64} {
  func.func @attention_kernel(%arg0: i32, %arg1: memref<16x32xbf16, #tpu.memory_space<vmem>>, %arg2: memref<2x32xf32, #tpu.memory_space<vmem>>, %arg3: memref<32x32xbf16, #tpu.memory_space<vmem>>, %arg4: memref<32x32xf32, #tpu.memory_space<vmem>>, %arg5: memref<1x32xf32, #tpu.memory_space<vmem>>, %arg6: memref<1x32xf32, #tpu.memory_space<vmem>>, %arg7: memref<2x8xf32, #tpu.memory_space<vmem>>) attributes {dimension_semantics = [#tpu.dimension_semantics<parallel>], iteration_bounds = array<i64: 1>, scalar_prefetch = 0 : i64, scratch_operands = 0 : i64, tpu.core_type = #tpu.core_type<tc>, window_params = [{transform_indices = @transform_0, window_bounds = array<i64: 16, 32>}, {transform_indices = @transform_1, window_bounds = array<i64: 2, 32>}, {pipeline_mode = #tpu.pipeline_mode<synchronous>, transform_indices = @transform_2, window_bounds = array<i64: 32, 32>}, {pipeline_mode = #tpu.pipeline_mode<synchronous>, transform_indices = @transform_3, window_bounds = array<i64: 32, 32>}, {pipeline_mode = #tpu.pipeline_mode<synchronous>, transform_indices = @transform_4, window_bounds = array<i64: 1, 32>}, {pipeline_mode = #tpu.pipeline_mode<synchronous>, transform_indices = @transform_5, window_bounds = array<i64: 1, 32>}, {transform_indices = @transform_6, window_bounds = array<i64: 2, 8>}]} {
    %c0 = arith.constant 0 : index
    %c0_0 = arith.constant 0 : index
    %0 = vector.load %arg1[%c0, %c0_0] : memref<16x32xbf16, #tpu.memory_space<vmem>>, vector<16x32xbf16>
    %c0_1 = arith.constant 0 : index
    %c0_2 = arith.constant 0 : index
    %1 = vector.load %arg3[%c0_1, %c0_2] : memref<32x32xbf16, #tpu.memory_space<vmem>>, vector<32x32xbf16>
    %cst = arith.constant dense<0.000000e+00> : vector<16x32xf32>
    %2 = tpu.matmul %0, %1, %cst {dimension_numbers = #tpu.dot_dimension_numbers<[1], [0], [0], [1], [0, 0, 1, 1], [], []>} : vector<16x32xbf16>, vector<32x32xbf16>, vector<16x32xf32> -> vector<16x32xf32>
    %c0_3 = arith.constant 0 : index
    %c0_4 = arith.constant 0 : index
    %3 = vector.load %arg2[%c0_3, %c0_4] : memref<2x32xf32, #tpu.memory_space<vmem>>, vector<2x32xf32>
    %c0_5 = arith.constant 0 : index
    %c0_6 = arith.constant 0 : index
    %4 = vector.load %arg4[%c0_5, %c0_6] : memref<32x32xf32, #tpu.memory_space<vmem>>, vector<32x32xf32>
    %cst_7 = arith.constant dense<0.000000e+00> : vector<2x32xf32>
    %5 = tpu.matmul %3, %4, %cst_7 {dimension_numbers = #tpu.dot_dimension_numbers<[1], [0], [0], [1], [0, 0, 1, 1], [], []>} : vector<2x32xf32>, vector<32x32xf32>, vector<2x32xf32> -> vector<2x32xf32>
    %c0_8 = arith.constant 0 : index
    %c0_9 = arith.constant 0 : index
    %6 = vector.load %arg5[%c0_8, %c0_9] : memref<1x32xf32, #tpu.memory_space<vmem>>, vector<1x32xf32>
    %7 = vector.broadcast %6 : vector<1x32xf32> to vector<2x32xf32>
    %8 = arith.addf %5, %7 : vector<2x32xf32>
    %9 = vector.shape_cast %2 : vector<16x32xf32> to vector<2x8x32xf32>
    %10 = vector.shape_cast %8 : vector<2x32xf32> to vector<2x1x32xf32>
    %11 = vector.broadcast %10 : vector<2x1x32xf32> to vector<2x8x32xf32>
    %12 = arith.addf %9, %11 : vector<2x8x32xf32>
    %13 = math.tanh %12 : vector<2x8x32xf32>
    %c0_10 = arith.constant 0 : index
    %c0_11 = arith.constant 0 : index
    %14 = vector.load %arg6[%c0_10, %c0_11] : memref<1x32xf32, #tpu.memory_space<vmem>>, vector<1x32xf32>
    %15 = vector.shape_cast %14 : vector<1x32xf32> to vector<1x1x32xf32>
    %16 = vector.broadcast %15 : vector<1x1x32xf32> to vector<2x8x32xf32>
    %17 = arith.mulf %13, %16 : vector<2x8x32xf32>
    %cst_12 = arith.constant dense<0.000000e+00> : vector<2x8xf32>
    %18 = vector.multi_reduction <add>, %17, %cst_12 [2] : vector<2x8x32xf32> to vector<2x8xf32>
    %cst_13 = arith.constant dense<0xFF800000> : vector<2xf32>
    %19 = vector.multi_reduction <maximumf>, %18, %cst_13 [1] : vector<2x8xf32> to vector<2xf32>
    %20 = vector.shape_cast %19 : vector<2xf32> to vector<2x1xf32>
    %21 = vector.broadcast %20 : vector<2x1xf32> to vector<2x8xf32>
    %22 = arith.subf %18, %21 : vector<2x8xf32>
    %23 = math.exp %22 : vector<2x8xf32>
    %cst_14 = arith.constant dense<0.000000e+00> : vector<2xf32>
    %24 = vector.multi_reduction <add>, %23, %cst_14 [1] : vector<2x8xf32> to vector<2xf32>
    %25 = vector.shape_cast %24 : vector<2xf32> to vector<2x1xf32>
    %26 = tpu.reciprocal %25 {approx = true} : vector<2x1xf32> -> vector<2x1xf32>
    %27 = vector.broadcast %26 : vector<2x1xf32> to vector<2x8xf32>
    %28 = arith.mulf %23, %27 : vector<2x8xf32>
    %c0_15 = arith.constant 0 : index
    %c0_16 = arith.constant 0 : index
    %29 = vector.load %arg7[%c0_15, %c0_16] : memref<2x8xf32, #tpu.memory_space<vmem>>, vector<2x8xf32>
    tpu.vector_store %arg7[%c0_15, %c0_16], %28 {strides = array<i32>} : memref<2x8xf32, #tpu.memory_space<vmem>>, vector<2x8xf32>,
    return
  }
  func.func @transform_0(%arg0: i32) -> (i32, i32) {
    %c0_i32 = arith.constant 0 : i32
    %c0_i32_0 = arith.constant 0 : i32
    return %arg0, %c0_i32 : i32, i32
  }
  func.func @transform_1(%arg0: i32) -> (i32, i32) {
    %c0_i32 = arith.constant 0 : i32
    %c0_i32_0 = arith.constant 0 : i32
    return %arg0, %c0_i32 : i32, i32
  }
  func.func @transform_2(%arg0: i32) -> (i32, i32) {
    %c0_i32 = arith.constant 0 : i32
    %c0_i32_0 = arith.constant 0 : i32
    %c0_i32_1 = arith.constant 0 : i32
    return %c0_i32, %c0_i32_0 : i32, i32
  }
  func.func @transform_3(%arg0: i32) -> (i32, i32) {
    %c0_i32 = arith.constant 0 : i32
    %c0_i32_0 = arith.constant 0 : i32
    %c0_i32_1 = arith.constant 0 : i32
    return %c0_i32, %c0_i32_0 : i32, i32
  }
  func.func @transform_4(%arg0: i32) -> (i32, i32) {
    %c0_i32 = arith.constant 0 : i32
    %c0_i32_0 = arith.constant 0 : i32
    %c0_i32_1 = arith.constant 0 : i32
    return %c0_i32, %c0_i32_0 : i32, i32
  }
  func.func @transform_5(%arg0: i32) -> (i32, i32) {
    %c0_i32 = arith.constant 0 : i32
    %c0_i32_0 = arith.constant 0 : i32
    %c0_i32_1 = arith.constant 0 : i32
    return %c0_i32, %c0_i32_0 : i32, i32
  }
  func.func @transform_6(%arg0: i32) -> (i32, i32) {
    %c0_i32 = arith.constant 0 : i32
    %c0_i32_0 = arith.constant 0 : i32
    return %arg0, %c0_i32 : i32, i32
  }
}

</mosaic_0001>

<llo_original>
// kernel: tpu_custom_call.1
$region0: #{tpu_custom_call.1}
  #allocation0 [shape = 'u32[]', space=smem, size = 0x4, offset = 0x4, fixed_abs, tag = 'smem constant byte address 0x4 - core index']
  #allocation1 [shape = 'u32[144,128]{1,0:T(1,128)}', space=vmem, size = 0x12000, scoped, tag = 'internal scratch']
  %s0 = inlined_call_operand.hbm [shape: bf16[16,32], index: 0, kind: input, shape index: {}]
  %s1 = inlined_call_operand.vmem [shape: f32[2,32], index: 1, kind: input, shape index: {}]
  %s2 = inlined_call_operand.hbm [shape: bf16[32,32], index: 2, kind: input, shape index: {}]
  %s3 = inlined_call_operand.hbm [shape: f32[32,32], index: 3, kind: input, shape index: {}]
  %s4 = inlined_call_operand.vmem [shape: f32[1,32], index: 4, kind: input, shape index: {}]
  %s5 = inlined_call_operand.vmem [shape: f32[1,32], index: 5, kind: input, shape index: {}]
  %s6 = inlined_call_operand.hbm [shape: f32[2,8], index: 6, kind: output, shape index: {}]
  %s7 = sld [smem:[#allocation0]]
  $region46: #{tpu_custom_call.1} parent=0
    _
  %s9 = ssub.s32 1, %s7
  %s10 = scalar_select 0, %s9, %s7
  $region1: #{tpu_custom_call.1} parent=0
    #allocation2 [shape = 'u8[4096]{0}', space=vmem, size = 0x1000, scoped, tag = 'input window, operand 0, single buffered']
    #allocation3 [shape = 's32[1]{0}', space=sflag, size = 0x4, scoped, tag = 'scoped memory for tpu_custom_call.1']
    #allocation4 [shape = 's32[1]{0}', space=sflag, size = 0x4, scoped, tag = 'scoped memory for tpu_custom_call.1']
    #allocation5 [shape = 'u8[8192]{0}', space=vmem, size = 0x2000, scoped, tag = 'input window, operand 2, single buffered']
    #allocation6 [shape = 's32[1]{0}', space=sflag, size = 0x4, scoped, tag = 'scoped memory for tpu_custom_call.1']
    #allocation7 [shape = 'u8[16384]{0}', space=vmem, size = 0x4000, scoped, tag = 'input window, operand 3, single buffered']
    #allocation8 [shape = 'u8[1024]{0}', space=vmem, size = 0x400, scoped, tag = 'output window, operand 0, single buffered']
    %11 = vsyncpa [#allocation3], 0
    %12 = vsyncpa [#allocation6], 0
    %13 = vsyncpa [#allocation4], 0
    // Predicated region
    $region2: #{tpu_custom_call.1} parent=1 // pred_check
      _
    $region3: #{tpu_custom_call.1} parent=1 // pred_check_branch
      %15 = sbr.rel (0) target = $region5
    $region4: #{tpu_custom_call.1} parent=1 // pred_region
      %s17 = ssub.s32 128, 128
      %18 = vsyncadd [#allocation3], %s17
      %s19 = sshll.u32 [#allocation2], 4
      %s20 = int_to_ptr.vmem [resolvable:$true] %s19
      %25 = dma.hbm_to_vmem [thread:$0]  %s0, 128, %s20, [#allocation3], 64, 64, 4
    $region5: #{tpu_custom_call.1} parent=1 // pred_fallthru
      _
    // Predicated region
    $region6: #{tpu_custom_call.1} parent=1 // pred_check
      _
    $region7: #{tpu_custom_call.1} parent=1 // pred_check_branch
      %27 = sbr.rel (0) target = $region9
    $region8: #{tpu_custom_call.1} parent=1 // pred_region
      _
    $region9: #{tpu_custom_call.1} parent=1 // pred_fallthru
      _
    // Predicated region
    $region10: #{tpu_custom_call.1} parent=1 // pred_check
      _
    $region11: #{tpu_custom_call.1} parent=1 // pred_check_branch
      %29 = sbr.rel (0) target = $region13
    $region12: #{tpu_custom_call.1} parent=1 // pred_region
      %s31 = ssub.s32 256, 256
      %32 = vsyncadd [#allocation6], %s31
      %s33 = sshll.u32 [#allocation5], 4
      %s34 = int_to_ptr.vmem [resolvable:$true] %s33
      %39 = dma.hbm_to_vmem [thread:$0]  %s2, 256, %s34, [#allocation6], 64, 64, 4
    $region13: #{tpu_custom_call.1} parent=1 // pred_fallthru
      _
    // Predicated region
    $region14: #{tpu_custom_call.1} parent=1 // pred_check
      _
    $region15: #{tpu_custom_call.1} parent=1 // pred_check_branch
      %41 = sbr.rel (0) target = $region17
    $region16: #{tpu_custom_call.1} parent=1 // pred_region
      %s43 = ssub.s32 512, 512
      %44 = vsyncadd [#allocation6], %s43
      %s45 = sshll.u32 [#allocation7], 4
      %s46 = int_to_ptr.vmem [resolvable:$true] %s45
      %51 = dma.hbm_to_vmem [thread:$0]  %s3, 512, %s46, [#allocation6], 128, 128, 8
    $region17: #{tpu_custom_call.1} parent=1 // pred_fallthru
      _
    // Predicated region
    $region18: #{tpu_custom_call.1} parent=1 // pred_check
      _
    $region19: #{tpu_custom_call.1} parent=1 // pred_check_branch
      %53 = sbr.rel (0) target = $region21
    $region20: #{tpu_custom_call.1} parent=1 // pred_region
      _
    $region21: #{tpu_custom_call.1} parent=1 // pred_fallthru
      _
    // Predicated region
    $region22: #{tpu_custom_call.1} parent=1 // pred_check
      _
    $region23: #{tpu_custom_call.1} parent=1 // pred_check_branch
      %55 = sbr.rel (0) target = $region25
    $region24: #{tpu_custom_call.1} parent=1 // pred_region
      _
    $region25: #{tpu_custom_call.1} parent=1 // pred_fallthru
      _
    // Predicated region
    $region26: #{tpu_custom_call.1} parent=1 // pred_check
      _
    $region27: #{tpu_custom_call.1} parent=1 // pred_check_branch
      %57 = sbr.rel (0) target = $region29
    $region28: #{tpu_custom_call.1} parent=1 // pred_region
      %58 = dma.done [#allocation3], 128
    $region29: #{tpu_custom_call.1} parent=1 // pred_fallthru
      _
    // Predicated region
    $region30: #{tpu_custom_call.1} parent=1 // pred_check
      _
    $region31: #{tpu_custom_call.1} parent=1 // pred_check_branch
      %60 = sbr.rel (0) target = $region33
    $region32: #{tpu_custom_call.1} parent=1 // pred_region
      %61 = dma.done [#allocation6], 256
    $region33: #{tpu_custom_call.1} parent=1 // pred_fallthru
      _
    // Predicated region
    $region34: #{tpu_custom_call.1} parent=1 // pred_check
      _
    $region35: #{tpu_custom_call.1} parent=1 // pred_check_branch
      %63 = sbr.rel (0) target = $region37
    $region36: #{tpu_custom_call.1} parent=1 // pred_region
      %64 = dma.done [#allocation6], 512
    $region37: #{tpu_custom_call.1} parent=1 // pred_fallthru
      _
    %v66 = vld [vmem:[#allocation2] sm:$0xf]
    %v67 = vld [vmem:[#allocation2 + $0x4] sm:$0xf]
    %v68 = vld [vmem:[#allocation5] sm:$0xf]
    %v69 = vld [vmem:[#allocation5 + $0x4] sm:$0xf]
    %v70 = vld [vmem:[#allocation5 + $0x8] sm:$0xf]
    %v71 = vld [vmem:[#allocation5 + $0xc] sm:$0xf]
    %v74 = vunpack.c.l.b16 %v66
    %v75 = vunpack.c.l.b16 %v67
    %v76 = vpack.c.b16 %v75, %v74
    %v81 = vunpack.c.l.b16 %v68
    %v82 = vunpack.c.l.b16 %v69
    %v83 = vunpack.c.l.b16 %v70
    %v84 = vunpack.c.l.b16 %v71
    %v85 = vpack.c.b16 %v82, %v81
    %v86 = vpack.c.b16 %v84, %v83
    %vm89 = vcmask 261120
    %v91 = vsel %vm89, %v76, 0
    %93 = vmatprep.subr.bf16.mxu0 0
    %94 = vmatpush1.bf16.msra.mxu0 %v85
    %95 = vmatprep.subr.bf16.mxu0 0
    %96 = vmatpush1.bf16.msra.mxu0 %v86
    %97 = vmatprep.subr.bf16.mxu0 0
    %98 = vmatpush1.bf16.msra.mxu0 0
    %99 = vmatprep.subr.bf16.mxu0 0
    %100 = vmatpush1.bf16.msra.mxu0 0
    %101 = vmatprep.subr.bf16.mxu0 0
    %102 = vmatpush1.bf16.msra.mxu0 0
    %103 = vmatprep.subr.bf16.mxu0 0
    %104 = vmatpush1.bf16.msra.mxu0 0
    %105 = vmatprep.subr.bf16.mxu0 0
    %106 = vmatpush1.bf16.msra.mxu0 0
    %107 = vmatprep.subr.bf16.mxu0 0
    %108 = vmatpush1.bf16.msra.mxu0 0
    %109 = vmatprep.subr.bf16.mxu0 0
    %110 = vmatpush1.bf16.msra.mxu0 0
    %111 = vmatprep.subr.bf16.mxu0 0
    %112 = vmatpush1.bf16.msra.mxu0 0
    %113 = vmatprep.subr.bf16.mxu0 0
    %114 = vmatpush1.bf16.msra.mxu0 0
    %115 = vmatprep.subr.bf16.mxu0 0
    %116 = vmatpush1.bf16.msra.mxu0 0
    %117 = vmatprep.subr.bf16.mxu0 0
    %118 = vmatpush1.bf16.msra.mxu0 0
    %119 = vmatprep.subr.bf16.mxu0 0
    %120 = vmatpush1.bf16.msra.mxu0 0
    %121 = vmatprep.subr.bf16.mxu0 0
    %122 = vmatpush1.bf16.msra.mxu0 0
    %123 = vmatprep.subr.bf16.mxu0 0
    %124 = vmatpush1.bf16.msra.mxu0 0
    %125 = vmatprep.mubr.bf16.mxu0 0
    %126 = vmatmul.mubr.bf16.gmra.mrb[0].mxu0 %v91
    %v127 = vpop.f32.mrb[0].mxu0
    %v128 = vadd.f32 0.0, %v127
    %v129 = vpop.f32.mrb[0].mxu0
    %v130 = vpop.f32.mrb[0].mxu0
    %v131 = vadd.f32 0.0, %v130
    %v132 = vpop.f32.mrb[0].mxu0
    %133 = vdwg.mxu0
    %v134 = vld [vmem:[%s1] sm:$0x3]
    %v135 = vld [vmem:[#allocation7] sm:$0xff]
    %v136 = vld [vmem:[#allocation7 + $0x8] sm:$0xff]
    %v137 = vld [vmem:[#allocation7 + $0x10] sm:$0xff]
    %v138 = vld [vmem:[#allocation7 + $0x18] sm:$0xff]
    %v139 = vld [vmem:[%s4] sm:$0x1]
    %v141 = vlaneseq
    %v142 = vshrl.u32 %v141, 7
    %v143 = vsub.s32 0, %v142
    %v144 = vrot.slane %v139, %v143
    %v147 = vsel %vm89, %v134, 0
    %149 = vmatprep.subr.mxu0 0.0
    %150 = vmatpush1.msra.mxu0 %v135
    %151 = vmatprep.subr.mxu0 0.0
    %152 = vmatpush1.msra.mxu0 %v136
    %153 = vmatprep.subr.mxu0 0.0
    %154 = vmatpush1.msra.mxu0 %v137
    %155 = vmatprep.subr.mxu0 0.0
    %156 = vmatpush1.msra.mxu0 %v138
    %157 = vmatprep.subr.mxu0 0.0
    %158 = vmatpush1.msra.mxu0 0.0
    %159 = vmatprep.subr.mxu0 0.0
    %160 = vmatpush1.msra.mxu0 0.0
    %161 = vmatprep.subr.mxu0 0.0
    %162 = vmatpush1.msra.mxu0 0.0
    %163 = vmatprep.subr.mxu0 0.0
    %164 = vmatpush1.msra.mxu0 0.0
    %165 = vmatprep.subr.mxu0 0.0
    %166 = vmatpush1.msra.mxu0 0.0
    %167 = vmatprep.subr.mxu0 0.0
    %168 = vmatpush1.msra.mxu0 0.0
    %169 = vmatprep.subr.mxu0 0.0
    %170 = vmatpush1.msra.mxu0 0.0
    %171 = vmatprep.subr.mxu0 0.0
    %172 = vmatpush1.msra.mxu0 0.0
    %173 = vmatprep.subr.mxu0 0.0
    %174 = vmatpush1.msra.mxu0 0.0
    %175 = vmatprep.subr.mxu0 0.0
    %176 = vmatpush1.msra.mxu0 0.0
    %177 = vmatprep.subr.mxu0 0.0
    %178 = vmatpush1.msra.mxu0 0.0
    %179 = vmatprep.subr.mxu0 0.0
    %180 = vmatpush1.msra.mxu0 0.0
    %181 = vmatprep.subr.mxu0 0.0
    %182 = vmatpush1.msra.mxu0 0.0
    %183 = vmatprep.subr.mxu0 0.0
    %184 = vmatpush1.msra.mxu0 0.0
    %185 = vmatprep.subr.mxu0 0.0
    %186 = vmatpush1.msra.mxu0 0.0
    %187 = vmatprep.subr.mxu0 0.0
    %188 = vmatpush1.msra.mxu0 0.0
    %189 = vmatprep.subr.mxu0 0.0
    %190 = vmatpush1.msra.mxu0 0.0
    %191 = vmatprep.subr.mxu0 0.0
    %192 = vmatpush1.msra.mxu0 0.0
    %193 = vmatprep.subr.mxu0 0.0
    %194 = vmatpush1.msra.mxu0 0.0
    %195 = vmatprep.subr.mxu0 0.0
    %196 = vmatpush1.msra.mxu0 0.0
    %197 = vmatprep.subr.mxu0 0.0
    %198 = vmatpush1.msra.mxu0 0.0
    %199 = vmatprep.subr.mxu0 0.0
    %200 = vmatpush1.msra.mxu0 0.0
    %201 = vmatprep.subr.mxu0 0.0
    %202 = vmatpush1.msra.mxu0 0.0
    %203 = vmatprep.subr.mxu0 0.0
    %204 = vmatpush1.msra.mxu0 0.0
    %205 = vmatprep.subr.mxu0 0.0
    %206 = vmatpush1.msra.mxu0 0.0
    %207 = vmatprep.subr.mxu0 0.0
    %208 = vmatpush1.msra.mxu0 0.0
    %209 = vmatprep.subr.mxu0 0.0
    %210 = vmatpush1.msra.mxu0 0.0
    %211 = vmatprep.subr.mxu0 0.0
    %212 = vmatpush1.msra.mxu0 0.0
    %213 = vmatprep.mubr.f32.mxu0 0.0
    %214 = vmatmul.mubr.f32.gmra.mrb[0].mxu0 %v147
    %v215 = vpop.f32.mrb[0].mxu0
    %v216 = vadd.f32 %v144, %v215
    %v217 = vpop.f32.mrb[0].mxu0
    %218 = vdwg.mxu0
    %v221 = vunpack.c.l.s4 1966171168
    %v222 = vunpack.c.0.s8 %v221
    %v223 = vlaneseq
    %v224 = vshrl.u32 %v223, 7
    %v225 = vsub.s32 %v222, %v224
    %v226 = vrot.slane %v216, %v225
    %v227 = vcombine.high %v226, %v226
    %v229 = vunpack.c.l.s4 1966171168
    %v230 = vunpack.c.0.s8 %v229
    %v231 = vlaneseq
    %v232 = vshrl.u32 %v231, 7
    %v233 = vsub.s32 %v230, %v232
    %v234 = vrot.slane %v226, %v233
    %v236 = vunpack.c.l.s4 1966171168
    %v237 = vunpack.c.0.s8 %v236
    %v238 = vlaneseq
    %v239 = vshrl.u32 %v238, 7
    %v240 = vsub.s32 %v237, %v239
    %v241 = vrot.slane %v227, %v240
    %v242 = vlaneseq
    %v243 = vshrl.u32 %v242, 7
    %v244 = vsub.s32 0, %v243
    %v245 = vrot.slane %v234, %v244
    %v246 = vlaneseq
    %v247 = vshrl.u32 %v246, 7
    %v248 = vsub.s32 0, %v247
    %v249 = vrot.slane %v241, %v248
    %v252 = vadd.f32 %v128, %v245
    %v253 = vadd.f32 %v131, %v249
    %v254 = vtanh.pop %v252
    %v255 = vtanh.pop %v253
    %v256 = vld [vmem:[%s5] sm:$0x1]
    %v258 = vlaneseq
    %v259 = vshrl.u32 %v258, 7
    %v260 = vsub.s32 0, %v259
    %v261 = vrot.slane %v256, %v260
    %v263 = vmul.f32 %v254, %v261
    %v264 = vmul.f32 %v255, %v261
    %v265 = vsel %vm89, %v263, 0.0
    %266 = vadd.xlane.f32.xlu0 %v265
    %v267 = vpop.xlane.xlu0 %266
    %v268 = vsel %vm89, %v264, 0.0
    %269 = vadd.xlane.f32.xlu0 %v268
    %v270 = vpop.xlane.xlu0 %269
    %v273 = vlaneseq
    %v274 = vand.u32 %v273, 127
    %v275 = vlaneseq
    %v276 = vshrl.u32 %v275, 7
    %v277 = vsub.s32 %v274, %v276
    %v278 = vrot.slane %v267, %v277
    %v279 = vlaneseq
    %v280 = vshrl.u32 %v279, 7
    %v281 = vsub.s32 %v274, %v280
    %v282 = vrot.slane %v270, %v281
    %vm283 = vcmask 1041409
    %v284 = vsel %vm283, %v282, %v278
    %vm286 = vcmask 58368
    %v287 = vsel %vm286, %v284, -inf
    %288 = vmax.xlane.f32.xlu0 %v287
    %v289 = vpop.xlane.xlu0 %288
    %v291 = vlaneseq
    %v292 = vshrl.u32 %v291, 7
    %v293 = vsub.s32 0, %v292
    %v294 = vrot.slane %v289, %v293
    %v295 = vlaneseq
    %v296 = vshrl.u32 %v295, 7
    %v297 = vsub.s32 1, %v296
    %v298 = vrot.slane %v289, %v297
    %v301 = vsub.f32 %v267, %v294
    %v302 = vsub.f32 %v270, %v298
    %v303 = vmul.f32 %v301, 1.442695
    %v304 = vpow.pop %v303
    %v305 = vmul.f32 %v302, 1.442695
    %v306 = vpow.pop %v305
    %309 = vset.pattern.permute.xlu0 0
    %310 = vperm.xlu0 %309, %v304
    %v311 = vpop.permute.xlu0 %310
    %312 = vset.pattern.permute.xlu0 0
    %313 = vperm.xlu0 %312, %v306
    %v314 = vpop.permute.xlu0 %313
    %v315 = vlaneseq
    %v316 = vshrl.u32 %v315, 7
    %v317 = vsub.s32 %v274, %v316
    %v318 = vrot.slane %v311, %v317
    %v319 = vlaneseq
    %v320 = vshrl.u32 %v319, 7
    %v321 = vsub.s32 %v274, %v320
    %v322 = vrot.slane %v314, %v321
    %v323 = vsel %vm283, %v322, %v318
    %v325 = vsel %vm286, %v323, 0.0
    %326 = vadd.xlane.f32.xlu0 %v325
    %v327 = vpop.xlane.xlu0 %326
    %v328 = vrcp.pop %v327
    %v330 = vlaneseq
    %v331 = vshrl.u32 %v330, 7
    %v332 = vsub.s32 0, %v331
    %v333 = vrot.slane %v328, %v332
    %v334 = vlaneseq
    %v335 = vshrl.u32 %v334, 7
    %v336 = vsub.s32 1, %v335
    %v337 = vrot.slane %v328, %v336
    %v340 = vmul.f32 %v304, %v333
    %v341 = vmul.f32 %v306, %v337
    %344 = vset.pattern.permute.xlu0 0
    %345 = vperm.xlu0 %344, %v340
    %v346 = vpop.permute.xlu0 %345
    %347 = vset.pattern.permute.xlu0 0
    %348 = vperm.xlu0 %347, %v341
    %v349 = vpop.permute.xlu0 %348
    %v350 = vlaneseq
    %v351 = vshrl.u32 %v350, 7
    %v352 = vsub.s32 %v274, %v351
    %v353 = vrot.slane %v346, %v352
    %v354 = vlaneseq
    %v355 = vshrl.u32 %v354, 7
    %v356 = vsub.s32 %v274, %v355
    %v357 = vrot.slane %v349, %v356
    %v358 = vsel %vm283, %v357, %v353
    %360 = vst.msk [vmem:[#allocation8] sm:$0x3] %vm286, %v358
    // Predicated region
    $region38: #{tpu_custom_call.1} parent=1 // pred_check
      _
    $region39: #{tpu_custom_call.1} parent=1 // pred_check_branch
      %362 = sbr.rel (0) target = $region41
    $region40: #{tpu_custom_call.1} parent=1 // pred_region
      %s364 = ssub.s32 32, 32
      %365 = vsyncadd [#allocation4], %s364
      %s367 = sshll.u32 [#allocation8], 4
      %s368 = int_to_ptr.vmem [resolvable:$true] %s367
      %370 = dma.vmem_to_hbm [thread:$0]  %s368, 32, %s6, [#allocation4]
    $region41: #{tpu_custom_call.1} parent=1 // pred_fallthru
      _
    // Predicated region
    $region42: #{tpu_custom_call.1} parent=1 // pred_check
      _
    $region43: #{tpu_custom_call.1} parent=1 // pred_check_branch
      %372 = sbr.rel (0) target = $region45
    $region44: #{tpu_custom_call.1} parent=1 // pred_region
      %373 = dma.done [#allocation4], 32
    $region45: #{tpu_custom_call.1} parent=1 // pred_fallthru
      _
    %374 = vsyncpa [#allocation3], 1
    %375 = vsyncpa [#allocation6], 1
    %376 = vsyncpa [#allocation4], 1

</llo_original>
